<compile_context>
chip_gen: v7x
topology: tpu7x:2x2x1
jax: 0.10.0
libtpu: 0.0.40
codegen_flags: <defaults>
</compile_context>

<pallas_src>
import functools

import jax
import jax.numpy as jnp
from jax import lax
from jax.experimental import pallas as pl
from jax.experimental.pallas import tpu as pltpu


def _outconv_matmul_kernel(w_ref, x_ref, o_ref):
    """One grid step: out[:, l0:l0+TL] = W2d @ col[:, l0:l0+TL].

    w_ref: (outC_pad, CK3_pad)  zero-padded 2-D weight slab, VMEM resident
    x_ref: (CK3_pad, TL)        im2col lane tile (lane index = n*S + s)
    o_ref: (outC_pad, TL)       lane-dense output tile
    """
    o_ref[...] = jnp.dot(
        w_ref[...], x_ref[...], preferred_element_type=jnp.float32
    ).astype(o_ref.dtype)


def _round_up(x, m):
    return -(-x // m) * m


def _vmem_capacity_bytes():
    try:
        return int(pltpu.get_tpu_info().vmem_capacity_bytes)
    except Exception:
        return 64 << 20  # conservative fallback (v7x physical VMEM)


def _num_megacore_tiles():
    """2 TensorCores share the grid on v4/v5p (megacore) and v7x; 1 elsewhere."""
    try:
        kind = jax.devices()[0].device_kind.lower()
    except Exception:
        return 1
    return 2 if ("v7" in kind or "v5p" in kind or "v4" in kind) else 1


def _choose_lane_tile(lane_total, ck3_pad, outc_pad, itemsize,
                      budget_bytes, want_tiles):
    """Pick lane tile TL: a multiple of 128 dividing lane_total (or the full
    extent). Accounts for the resident weight plus double-buffered input and
    output tiles."""
    def step_bytes(tl):
        return itemsize * (outc_pad * ck3_pad       # weight slab
                           + 2 * ck3_pad * tl       # col tile, double-buffered
                           + 2 * outc_pad * tl)     # out tile, double-buffered

    if lane_total % 128 != 0:
        return lane_total  # full-extent block is always legal

    candidates = [t for t in range(128, lane_total + 1, 128)
                  if lane_total % t == 0]
    preferred = lane_total // want_tiles            # megacore sharding target
    if preferred in candidates and step_bytes(preferred) <= budget_bytes:
        return preferred
    fitting = [t for t in candidates if step_bytes(t) <= budget_bytes]
    if fitting:
        return max(fitting)
    return candidates[0]  # best effort if even the smallest tile exceeds budget


@functools.partial(jax.jit, static_argnames=("kernel_size", "padding"))
def outconv_forward(x_ncdhw, weight_oidhw, kernel_size, padding):
    """Equivalent of outconv(inC, outC, kernel_size, padding).forward(x)."""
    N, C, D, H, W = x_ncdhw.shape
    outC = weight_oidhw.shape[0]
    K = int(kernel_size)
    P = int(padding)
    D_out = D + 2 * P - K + 1
    H_out = H + 2 * P - K + 1
    W_out = W + 2 * P - K + 1
    S = D_out * H_out * W_out
    CK3 = C * K * K * K
    L = N * S                                      # batch folded into lanes

    CK3_pad = _round_up(CK3, 128)                  # MXU contraction depth
    outC_pad = _round_up(outC, 8)                  # dense sublane rows

    # --- im2col glue: fused by XLA under jit, feeds the kernel input copy ---
    xp = jnp.pad(x_ncdhw, ((0, 0), (0, 0), (P, P), (P, P), (P, P)))
    patches = jnp.stack(
        [xp[:, :, kd:kd + D_out, kh:kh + H_out, kw:kw + W_out]
         for kd in range(K) for kh in range(K) for kw in range(K)],
        axis=0)                                    # (K^3, N, C, Do, Ho, Wo)
    # Rows ordered (c, kd, kh, kw) -> matches row-major OIDHW weight reshape;
    # lanes ordered (n, d, h, w) -> batch folded into the lane axis.
    col = patches.transpose(2, 0, 1, 3, 4, 5).reshape(CK3, L)
    col = jnp.pad(col, ((0, CK3_pad - CK3), (0, 0)))

    w2d = jnp.pad(weight_oidhw.reshape(outC, CK3).astype(x_ncdhw.dtype),
                  ((0, outC_pad - outC), (0, CK3_pad - CK3)))

    # --- tile choice / VMEM accounting ---
    itemsize = jnp.dtype(x_ncdhw.dtype).itemsize
    cap = _vmem_capacity_bytes()
    budget = int(cap * 0.4)
    want_tiles = _num_megacore_tiles()
    TL = _choose_lane_tile(L, CK3_pad, outC_pad, itemsize, budget, want_tiles)
    n_tiles = L // TL

    need = itemsize * (outC_pad * CK3_pad + 2 * CK3_pad * TL + 2 * outC_pad * TL)
    vmem_limit = int(min(cap // 2, max(2 * need, 32 << 20)))

    out_flat = pl.pallas_call(
        _outconv_matmul_kernel,
        out_shape=jax.ShapeDtypeStruct((outC_pad, L), x_ncdhw.dtype),
        grid_spec=pltpu.PrefetchScalarGridSpec(
            num_scalar_prefetch=0,
            grid=(n_tiles,),
            in_specs=[
                # Full (8,128) weight slab, reused by every grid step.
                pl.BlockSpec((outC_pad, CK3_pad), lambda t: (0, 0)),
                # Lane-dense im2col tile.
                pl.BlockSpec((CK3_pad, TL), lambda t: (0, t)),
            ],
            out_specs=pl.BlockSpec((outC_pad, TL), lambda t: (0, t)),
        ),
        compiler_params=pltpu.CompilerParams(
            dimension_semantics=("parallel",),
            vmem_limit_bytes=vmem_limit,
        ),
    )(w2d, col)

    # Strip channel padding, un-fold the batch from the lane axis, back to NCDHW.
    out = out_flat[:outC].reshape(outC, N, D_out, H_out, W_out)
    return jnp.transpose(out, (1, 0, 2, 3, 4))


if __name__ == "__main__":
    # Module hyper-parameters (synthetic, deterministic).
    inC, outC, kernel_size, padding = 4, 3, 3, 1
    N, D, H, W = 2, 8, 8, 8

    key = jax.random.PRNGKey(0)
    kx, kwt = jax.random.split(key)
    x = jax.random.normal(kx, (N, inC, D, H, W), dtype=jnp.float32)          # NCDHW
    weight = jax.random.normal(kwt, (outC, inC, kernel_size, kernel_size,
                                     kernel_size), dtype=jnp.float32) * 0.1   # OIDHW

    out = jax.block_until_ready(
        outconv_forward(x, weight, kernel_size=kernel_size, padding=padding))

    # Reference check against XLA's conv (same semantics as torch Conv3d, no bias).
    ref = lax.conv_general_dilated(
        x, weight, window_strides=(1, 1, 1),
        padding=[(padding, padding)] * 3,
        dimension_numbers=("NCDHW", "OIDHW", "NCDHW"))
    ref = jax.block_until_ready(ref)

    assert out.shape == ref.shape == (N, outC, D, H, W), (out.shape, ref.shape)
    assert jnp.allclose(out, ref, atol=1e-4, rtol=1e-4), float(
        jnp.max(jnp.abs(out - ref)))

    print("KERNEL_OK")
</pallas_src>

<mosaic_0001>
module attributes {stable_mosaic.version = 11 : i64} {
  func.func @_outconv_matmul_kernel(%arg0: i32, %arg1: memref<8x128xf32, #tpu.memory_space<vmem>>, %arg2: memref<128x1024xf32, #tpu.memory_space<vmem>>, %arg3: memref<8x1024xf32, #tpu.memory_space<vmem>>) attributes {dimension_semantics = [#tpu.dimension_semantics<parallel>], iteration_bounds = array<i64: 1>, scalar_prefetch = 0 : i64, scratch_operands = 0 : i64, tpu.core_type = #tpu.core_type<tc>, window_params = [{pipeline_mode = #tpu.pipeline_mode<synchronous>, transform_indices = @transform_0, window_bounds = array<i64: 8, 128>}, {transform_indices = @transform_1, window_bounds = array<i64: 128, 1024>}, {transform_indices = @transform_2, window_bounds = array<i64: 8, 1024>}]} {
    %c0 = arith.constant 0 : index
    %c0_0 = arith.constant 0 : index
    %0 = vector.load %arg1[%c0, %c0_0] : memref<8x128xf32, #tpu.memory_space<vmem>>, vector<8x128xf32>
    %c0_1 = arith.constant 0 : index
    %c0_2 = arith.constant 0 : index
    %1 = vector.load %arg2[%c0_1, %c0_2] : memref<128x1024xf32, #tpu.memory_space<vmem>>, vector<128x1024xf32>
    %cst = arith.constant dense<0.000000e+00> : vector<8x1024xf32>
    %2 = tpu.matmul %0, %1, %cst {dimension_numbers = #tpu.dot_dimension_numbers<[1], [0], [0], [1], [0, 0, 1, 1], [], []>} : vector<8x128xf32>, vector<128x1024xf32>, vector<8x1024xf32> -> vector<8x1024xf32>
    %c0_3 = arith.constant 0 : index
    %c0_4 = arith.constant 0 : index
    %3 = vector.load %arg3[%c0_3, %c0_4] : memref<8x1024xf32, #tpu.memory_space<vmem>>, vector<8x1024xf32>
    tpu.vector_store %arg3[%c0_3, %c0_4], %2 {strides = array<i32>} : memref<8x1024xf32, #tpu.memory_space<vmem>>, vector<8x1024xf32>,
    return
  }
  func.func @transform_0(%arg0: i32) -> (i32, i32) {
    %c0_i32 = arith.constant 0 : i32
    %c0_i32_0 = arith.constant 0 : i32
    %c0_i32_1 = arith.constant 0 : i32
    return %c0_i32, %c0_i32_0 : i32, i32
  }
  func.func @transform_1(%arg0: i32) -> (i32, i32) {
    %c0_i32 = arith.constant 0 : i32
    %c0_i32_0 = arith.constant 0 : i32
    return %c0_i32, %arg0 : i32, i32
  }
  func.func @transform_2(%arg0: i32) -> (i32, i32) {
    %c0_i32 = arith.constant 0 : i32
    %c0_i32_0 = arith.constant 0 : i32
    return %c0_i32, %arg0 : i32, i32
  }
}

</mosaic_0001>

<llo_original>
// kernel: outconv_forward.1
$region0: #{outconv_forward.1}
  #allocation0 [shape = 'u32[]', space=smem, size = 0x4, offset = 0x4, fixed_abs, tag = 'smem constant byte address 0x4 - core index']
  #allocation1 [shape = 'u32[144,128]{1,0:T(1,128)}', space=vmem, size = 0x12000, scoped, tag = 'internal scratch']
  %s0 = inlined_call_operand.vmem [shape: f32[8,128], index: 0, kind: input, shape index: {}]
  %s1 = inlined_call_operand.vmem [shape: f32[128,1024], index: 1, kind: input, shape index: {}]
  %s2 = inlined_call_operand.vmem [shape: f32[8,1024], index: 2, kind: output, shape index: {}]
  %s3 = sld [smem:[#allocation0]]
  $region18: #{outconv_forward.1} parent=0
    _
  %s5 = ssub.s32 1, %s3
  %s6 = scalar_select 0, %s5, %s3
  // Predicated region
  $region2: #{outconv_forward.1} parent=0 // pred_check
    _
  $region3: #{outconv_forward.1} parent=0 // pred_check_branch
    %8 = sbr.rel (0) target = $region5
  $region4: #{outconv_forward.1} parent=0 // pred_region
    _
  $region5: #{outconv_forward.1} parent=0 // pred_fallthru
    _
  // Predicated region
  $region6: #{outconv_forward.1} parent=0 // pred_check
    _
  $region7: #{outconv_forward.1} parent=0 // pred_check_branch
    %10 = sbr.rel (0) target = $region9
  $region8: #{outconv_forward.1} parent=0 // pred_region
    _
  $region9: #{outconv_forward.1} parent=0 // pred_fallthru
    _
  %v11 = vld [vmem:[%s0] sm:$0xff]
  %v12 = vld [vmem:[%s1] sm:$0xff]
  %v13 = vld [vmem:[%s1 + $0x8] sm:$0xff]
  %v14 = vld [vmem:[%s1 + $0x10] sm:$0xff]
  %v15 = vld [vmem:[%s1 + $0x18] sm:$0xff]
  %v16 = vld [vmem:[%s1 + $0x20] sm:$0xff]
  %v17 = vld [vmem:[%s1 + $0x28] sm:$0xff]
  %v18 = vld [vmem:[%s1 + $0x30] sm:$0xff]
  %v19 = vld [vmem:[%s1 + $0x38] sm:$0xff]
  %v20 = vld [vmem:[%s1 + $0x40] sm:$0xff]
  %v21 = vld [vmem:[%s1 + $0x48] sm:$0xff]
  %v22 = vld [vmem:[%s1 + $0x50] sm:$0xff]
  %v23 = vld [vmem:[%s1 + $0x58] sm:$0xff]
  %v24 = vld [vmem:[%s1 + $0x60] sm:$0xff]
  %v25 = vld [vmem:[%s1 + $0x68] sm:$0xff]
  %v26 = vld [vmem:[%s1 + $0x70] sm:$0xff]
  %v27 = vld [vmem:[%s1 + $0x78] sm:$0xff]
  %v28 = vld [vmem:[%s1 + $0x80] sm:$0xff]
  %v29 = vld [vmem:[%s1 + $0x88] sm:$0xff]
  %v30 = vld [vmem:[%s1 + $0x90] sm:$0xff]
  %v31 = vld [vmem:[%s1 + $0x98] sm:$0xff]
  %v32 = vld [vmem:[%s1 + $0xa0] sm:$0xff]
  %v33 = vld [vmem:[%s1 + $0xa8] sm:$0xff]
  %v34 = vld [vmem:[%s1 + $0xb0] sm:$0xff]
  %v35 = vld [vmem:[%s1 + $0xb8] sm:$0xff]
  %v36 = vld [vmem:[%s1 + $0xc0] sm:$0xff]
  %v37 = vld [vmem:[%s1 + $0xc8] sm:$0xff]
  %v38 = vld [vmem:[%s1 + $0xd0] sm:$0xff]
  %v39 = vld [vmem:[%s1 + $0xd8] sm:$0xff]
  %v40 = vld [vmem:[%s1 + $0xe0] sm:$0xff]
  %v41 = vld [vmem:[%s1 + $0xe8] sm:$0xff]
  %v42 = vld [vmem:[%s1 + $0xf0] sm:$0xff]
  %v43 = vld [vmem:[%s1 + $0xf8] sm:$0xff]
  %v44 = vld [vmem:[%s1 + $0x100] sm:$0xff]
  %v45 = vld [vmem:[%s1 + $0x108] sm:$0xff]
  %v46 = vld [vmem:[%s1 + $0x110] sm:$0xff]
  %v47 = vld [vmem:[%s1 + $0x118] sm:$0xff]
  %v48 = vld [vmem:[%s1 + $0x120] sm:$0xff]
  %v49 = vld [vmem:[%s1 + $0x128] sm:$0xff]
  %v50 = vld [vmem:[%s1 + $0x130] sm:$0xff]
  %v51 = vld [vmem:[%s1 + $0x138] sm:$0xff]
  %v52 = vld [vmem:[%s1 + $0x140] sm:$0xff]
  %v53 = vld [vmem:[%s1 + $0x148] sm:$0xff]
  %v54 = vld [vmem:[%s1 + $0x150] sm:$0xff]
  %v55 = vld [vmem:[%s1 + $0x158] sm:$0xff]
  %v56 = vld [vmem:[%s1 + $0x160] sm:$0xff]
  %v57 = vld [vmem:[%s1 + $0x168] sm:$0xff]
  %v58 = vld [vmem:[%s1 + $0x170] sm:$0xff]
  %v59 = vld [vmem:[%s1 + $0x178] sm:$0xff]
  %v60 = vld [vmem:[%s1 + $0x180] sm:$0xff]
  %v61 = vld [vmem:[%s1 + $0x188] sm:$0xff]
  %v62 = vld [vmem:[%s1 + $0x190] sm:$0xff]
  %v63 = vld [vmem:[%s1 + $0x198] sm:$0xff]
  %v64 = vld [vmem:[%s1 + $0x1a0] sm:$0xff]
  %v65 = vld [vmem:[%s1 + $0x1a8] sm:$0xff]
  %v66 = vld [vmem:[%s1 + $0x1b0] sm:$0xff]
  %v67 = vld [vmem:[%s1 + $0x1b8] sm:$0xff]
  %v68 = vld [vmem:[%s1 + $0x1c0] sm:$0xff]
  %v69 = vld [vmem:[%s1 + $0x1c8] sm:$0xff]
  %v70 = vld [vmem:[%s1 + $0x1d0] sm:$0xff]
  %v71 = vld [vmem:[%s1 + $0x1d8] sm:$0xff]
  %v72 = vld [vmem:[%s1 + $0x1e0] sm:$0xff]
  %v73 = vld [vmem:[%s1 + $0x1e8] sm:$0xff]
  %v74 = vld [vmem:[%s1 + $0x1f0] sm:$0xff]
  %v75 = vld [vmem:[%s1 + $0x1f8] sm:$0xff]
  %v76 = vld [vmem:[%s1 + $0x200] sm:$0xff]
  %v77 = vld [vmem:[%s1 + $0x208] sm:$0xff]
  %v78 = vld [vmem:[%s1 + $0x210] sm:$0xff]
  %v79 = vld [vmem:[%s1 + $0x218] sm:$0xff]
  %v80 = vld [vmem:[%s1 + $0x220] sm:$0xff]
  %v81 = vld [vmem:[%s1 + $0x228] sm:$0xff]
  %v82 = vld [vmem:[%s1 + $0x230] sm:$0xff]
  %v83 = vld [vmem:[%s1 + $0x238] sm:$0xff]
  %v84 = vld [vmem:[%s1 + $0x240] sm:$0xff]
  %v85 = vld [vmem:[%s1 + $0x248] sm:$0xff]
  %v86 = vld [vmem:[%s1 + $0x250] sm:$0xff]
  %v87 = vld [vmem:[%s1 + $0x258] sm:$0xff]
  %v88 = vld [vmem:[%s1 + $0x260] sm:$0xff]
  %v89 = vld [vmem:[%s1 + $0x268] sm:$0xff]
  %v90 = vld [vmem:[%s1 + $0x270] sm:$0xff]
  %v91 = vld [vmem:[%s1 + $0x278] sm:$0xff]
  %v92 = vld [vmem:[%s1 + $0x280] sm:$0xff]
  %v93 = vld [vmem:[%s1 + $0x288] sm:$0xff]
  %v94 = vld [vmem:[%s1 + $0x290] sm:$0xff]
  %v95 = vld [vmem:[%s1 + $0x298] sm:$0xff]
  %v96 = vld [vmem:[%s1 + $0x2a0] sm:$0xff]
  %v97 = vld [vmem:[%s1 + $0x2a8] sm:$0xff]
  %v98 = vld [vmem:[%s1 + $0x2b0] sm:$0xff]
  %v99 = vld [vmem:[%s1 + $0x2b8] sm:$0xff]
  %v100 = vld [vmem:[%s1 + $0x2c0] sm:$0xff]
  %v101 = vld [vmem:[%s1 + $0x2c8] sm:$0xff]
  %v102 = vld [vmem:[%s1 + $0x2d0] sm:$0xff]
  %v103 = vld [vmem:[%s1 + $0x2d8] sm:$0xff]
  %v104 = vld [vmem:[%s1 + $0x2e0] sm:$0xff]
  %v105 = vld [vmem:[%s1 + $0x2e8] sm:$0xff]
  %v106 = vld [vmem:[%s1 + $0x2f0] sm:$0xff]
  %v107 = vld [vmem:[%s1 + $0x2f8] sm:$0xff]
  %v108 = vld [vmem:[%s1 + $0x300] sm:$0xff]
  %v109 = vld [vmem:[%s1 + $0x308] sm:$0xff]
  %v110 = vld [vmem:[%s1 + $0x310] sm:$0xff]
  %v111 = vld [vmem:[%s1 + $0x318] sm:$0xff]
  %v112 = vld [vmem:[%s1 + $0x320] sm:$0xff]
  %v113 = vld [vmem:[%s1 + $0x328] sm:$0xff]
  %v114 = vld [vmem:[%s1 + $0x330] sm:$0xff]
  %v115 = vld [vmem:[%s1 + $0x338] sm:$0xff]
  %v116 = vld [vmem:[%s1 + $0x340] sm:$0xff]
  %v117 = vld [vmem:[%s1 + $0x348] sm:$0xff]
  %v118 = vld [vmem:[%s1 + $0x350] sm:$0xff]
  %v119 = vld [vmem:[%s1 + $0x358] sm:$0xff]
  %v120 = vld [vmem:[%s1 + $0x360] sm:$0xff]
  %v121 = vld [vmem:[%s1 + $0x368] sm:$0xff]
  %v122 = vld [vmem:[%s1 + $0x370] sm:$0xff]
  %v123 = vld [vmem:[%s1 + $0x378] sm:$0xff]
  %v124 = vld [vmem:[%s1 + $0x380] sm:$0xff]
  %v125 = vld [vmem:[%s1 + $0x388] sm:$0xff]
  %v126 = vld [vmem:[%s1 + $0x390] sm:$0xff]
  %v127 = vld [vmem:[%s1 + $0x398] sm:$0xff]
  %v128 = vld [vmem:[%s1 + $0x3a0] sm:$0xff]
  %v129 = vld [vmem:[%s1 + $0x3a8] sm:$0xff]
  %v130 = vld [vmem:[%s1 + $0x3b0] sm:$0xff]
  %v131 = vld [vmem:[%s1 + $0x3b8] sm:$0xff]
  %v132 = vld [vmem:[%s1 + $0x3c0] sm:$0xff]
  %v133 = vld [vmem:[%s1 + $0x3c8] sm:$0xff]
  %v134 = vld [vmem:[%s1 + $0x3d0] sm:$0xff]
  %v135 = vld [vmem:[%s1 + $0x3d8] sm:$0xff]
  %v136 = vld [vmem:[%s1 + $0x3e0] sm:$0xff]
  %v137 = vld [vmem:[%s1 + $0x3e8] sm:$0xff]
  %v138 = vld [vmem:[%s1 + $0x3f0] sm:$0xff]
  %v139 = vld [vmem:[%s1 + $0x3f8] sm:$0xff]
  %140 = vmatprep.subr.mxu0 %v13
  %141 = vmatpush1.msra.mxu0 %v12
  %142 = vmatprep.subr.mxu0 %v21
  %143 = vmatpush1.msra.mxu0 %v20
  %144 = vmatprep.subr.mxu0 %v29
  %145 = vmatpush1.msra.mxu0 %v28
  %146 = vmatprep.subr.mxu0 %v37
  %147 = vmatpush1.msra.mxu0 %v36
  %148 = vmatprep.subr.mxu0 %v45
  %149 = vmatpush1.msra.mxu0 %v44
  %150 = vmatprep.subr.mxu0 %v53
  %151 = vmatpush1.msra.mxu0 %v52
  %152 = vmatprep.subr.mxu0 %v61
  %153 = vmatpush1.msra.mxu0 %v60
  %154 = vmatprep.subr.mxu0 %v69
  %155 = vmatpush1.msra.mxu0 %v68
  %156 = vmatprep.subr.mxu0 %v77
  %157 = vmatpush1.msra.mxu0 %v76
  %158 = vmatprep.subr.mxu0 %v85
  %159 = vmatpush1.msra.mxu0 %v84
  %160 = vmatprep.subr.mxu0 %v93
  %161 = vmatpush1.msra.mxu0 %v92
  %162 = vmatprep.subr.mxu0 %v101
  %163 = vmatpush1.msra.mxu0 %v100
  %164 = vmatprep.subr.mxu0 %v109
  %165 = vmatpush1.msra.mxu0 %v108
  %166 = vmatprep.subr.mxu0 %v117
  %167 = vmatpush1.msra.mxu0 %v116
  %168 = vmatprep.subr.mxu0 %v125
  %169 = vmatpush1.msra.mxu0 %v124
  %170 = vmatprep.subr.mxu0 %v133
  %171 = vmatpush1.msra.mxu0 %v132
  %172 = vmatprep.subr.mxu0 0.0
  %173 = vmatpush1.msra.mxu0 0.0
  %174 = vmatprep.subr.mxu0 0.0
  %175 = vmatpush1.msra.mxu0 0.0
  %176 = vmatprep.subr.mxu0 0.0
  %177 = vmatpush1.msra.mxu0 0.0
  %178 = vmatprep.subr.mxu0 0.0
  %179 = vmatpush1.msra.mxu0 0.0
  %180 = vmatprep.subr.mxu0 0.0
  %181 = vmatpush1.msra.mxu0 0.0
  %182 = vmatprep.subr.mxu0 0.0
  %183 = vmatpush1.msra.mxu0 0.0
  %184 = vmatprep.subr.mxu0 0.0
  %185 = vmatpush1.msra.mxu0 0.0
  %186 = vmatprep.subr.mxu0 0.0
  %187 = vmatpush1.msra.mxu0 0.0
  %188 = vmatprep.subr.mxu0 0.0
  %189 = vmatpush1.msra.mxu0 0.0
  %190 = vmatprep.subr.mxu0 0.0
  %191 = vmatpush1.msra.mxu0 0.0
  %192 = vmatprep.subr.mxu0 0.0
  %193 = vmatpush1.msra.mxu0 0.0
  %194 = vmatprep.subr.mxu0 0.0
  %195 = vmatpush1.msra.mxu0 0.0
  %196 = vmatprep.subr.mxu0 0.0
  %197 = vmatpush1.msra.mxu0 0.0
  %198 = vmatprep.subr.mxu0 0.0
  %199 = vmatpush1.msra.mxu0 0.0
  %200 = vmatprep.subr.mxu0 0.0
  %201 = vmatpush1.msra.mxu0 0.0
  %202 = vmatprep.subr.mxu0 0.0
  %203 = vmatpush1.msra.mxu0 0.0
  %204 = vmatprep.mubr.f32.mxu0 0.0
  %205 = vmatmul.mubr.f32.gmra.mrb[0].mxu0 %v11
  %v206 = vpop.f32.mrb[0].mxu0
  %v207 = vadd.f32 0.0, %v206
  %v208 = vpop.f32.mrb[0].mxu0
  %v209 = vadd.f32 0.0, %v208
  %210 = vdwg.mxu0
  %211 = vmatprep.subr.mxu0 %v15
  %212 = vmatpush1.msra.mxu0 %v14
  %213 = vmatprep.subr.mxu0 %v23
  %214 = vmatpush1.msra.mxu0 %v22
  %215 = vmatprep.subr.mxu0 %v31
  %216 = vmatpush1.msra.mxu0 %v30
  %217 = vmatprep.subr.mxu0 %v39
  %218 = vmatpush1.msra.mxu0 %v38
  %219 = vmatprep.subr.mxu0 %v47
  %220 = vmatpush1.msra.mxu0 %v46
  %221 = vmatprep.subr.mxu0 %v55
  %222 = vmatpush1.msra.mxu0 %v54
  %223 = vmatprep.subr.mxu0 %v63
  %224 = vmatpush1.msra.mxu0 %v62
  %225 = vmatprep.subr.mxu0 %v71
  %226 = vmatpush1.msra.mxu0 %v70
  %227 = vmatprep.subr.mxu0 %v79
  %228 = vmatpush1.msra.mxu0 %v78
  %229 = vmatprep.subr.mxu0 %v87
  %230 = vmatpush1.msra.mxu0 %v86
  %231 = vmatprep.subr.mxu0 %v95
  %232 = vmatpush1.msra.mxu0 %v94
  %233 = vmatprep.subr.mxu0 %v103
  %234 = vmatpush1.msra.mxu0 %v102
  %235 = vmatprep.subr.mxu0 %v111
  %236 = vmatpush1.msra.mxu0 %v110
  %237 = vmatprep.subr.mxu0 %v119
  %238 = vmatpush1.msra.mxu0 %v118
  %239 = vmatprep.subr.mxu0 %v127
  %240 = vmatpush1.msra.mxu0 %v126
  %241 = vmatprep.subr.mxu0 %v135
  %242 = vmatpush1.msra.mxu0 %v134
  %243 = vmatprep.subr.mxu0 0.0
  %244 = vmatpush1.msra.mxu0 0.0
  %245 = vmatprep.subr.mxu0 0.0
  %246 = vmatpush1.msra.mxu0 0.0
  %247 = vmatprep.subr.mxu0 0.0
  %248 = vmatpush1.msra.mxu0 0.0
  %249 = vmatprep.subr.mxu0 0.0
  %250 = vmatpush1.msra.mxu0 0.0
  %251 = vmatprep.subr.mxu0 0.0
  %252 = vmatpush1.msra.mxu0 0.0
  %253 = vmatprep.subr.mxu0 0.0
  %254 = vmatpush1.msra.mxu0 0.0
  %255 = vmatprep.subr.mxu0 0.0
  %256 = vmatpush1.msra.mxu0 0.0
  %257 = vmatprep.subr.mxu0 0.0
  %258 = vmatpush1.msra.mxu0 0.0
  %259 = vmatprep.subr.mxu0 0.0
  %260 = vmatpush1.msra.mxu0 0.0
  %261 = vmatprep.subr.mxu0 0.0
  %262 = vmatpush1.msra.mxu0 0.0
  %263 = vmatprep.subr.mxu0 0.0
  %264 = vmatpush1.msra.mxu0 0.0
  %265 = vmatprep.subr.mxu0 0.0
  %266 = vmatpush1.msra.mxu0 0.0
  %267 = vmatprep.subr.mxu0 0.0
  %268 = vmatpush1.msra.mxu0 0.0
  %269 = vmatprep.subr.mxu0 0.0
  %270 = vmatpush1.msra.mxu0 0.0
  %271 = vmatprep.subr.mxu0 0.0
  %272 = vmatpush1.msra.mxu0 0.0
  %273 = vmatprep.subr.mxu0 0.0
  %274 = vmatpush1.msra.mxu0 0.0
  %275 = vmatprep.mubr.f32.mxu0 0.0
  %276 = vmatmul.mubr.f32.gmra.mrb[0].mxu0 %v11
  %v277 = vpop.f32.mrb[0].mxu0
  %v278 = vadd.f32 0.0, %v277
  %v279 = vpop.f32.mrb[0].mxu0
  %v280 = vadd.f32 0.0, %v279
  %281 = vdwg.mxu0
  %282 = vmatprep.subr.mxu0 %v17
  %283 = vmatpush1.msra.mxu0 %v16
  %284 = vmatprep.subr.mxu0 %v25
  %285 = vmatpush1.msra.mxu0 %v24
  %286 = vmatprep.subr.mxu0 %v33
  %287 = vmatpush1.msra.mxu0 %v32
  %288 = vmatprep.subr.mxu0 %v41
  %289 = vmatpush1.msra.mxu0 %v40
  %290 = vmatprep.subr.mxu0 %v49
  %291 = vmatpush1.msra.mxu0 %v48
  %292 = vmatprep.subr.mxu0 %v57
  %293 = vmatpush1.msra.mxu0 %v56
  %294 = vmatprep.subr.mxu0 %v65
  %295 = vmatpush1.msra.mxu0 %v64
  %296 = vmatprep.subr.mxu0 %v73
  %297 = vmatpush1.msra.mxu0 %v72
  %298 = vmatprep.subr.mxu0 %v81
  %299 = vmatpush1.msra.mxu0 %v80
  %300 = vmatprep.subr.mxu0 %v89
  %301 = vmatpush1.msra.mxu0 %v88
  %302 = vmatprep.subr.mxu0 %v97
  %303 = vmatpush1.msra.mxu0 %v96
  %304 = vmatprep.subr.mxu0 %v105
  %305 = vmatpush1.msra.mxu0 %v104
  %306 = vmatprep.subr.mxu0 %v113
  %307 = vmatpush1.msra.mxu0 %v112
  %308 = vmatprep.subr.mxu0 %v121
  %309 = vmatpush1.msra.mxu0 %v120
  %310 = vmatprep.subr.mxu0 %v129
  %311 = vmatpush1.msra.mxu0 %v128
  %312 = vmatprep.subr.mxu0 %v137
  %313 = vmatpush1.msra.mxu0 %v136
  %314 = vmatprep.subr.mxu0 0.0
  %315 = vmatpush1.msra.mxu0 0.0
  %316 = vmatprep.subr.mxu0 0.0
  %317 = vmatpush1.msra.mxu0 0.0
  %318 = vmatprep.subr.mxu0 0.0
  %319 = vmatpush1.msra.mxu0 0.0
  %320 = vmatprep.subr.mxu0 0.0
  %321 = vmatpush1.msra.mxu0 0.0
  %322 = vmatprep.subr.mxu0 0.0
  %323 = vmatpush1.msra.mxu0 0.0
  %324 = vmatprep.subr.mxu0 0.0
  %325 = vmatpush1.msra.mxu0 0.0
  %326 = vmatprep.subr.mxu0 0.0
  %327 = vmatpush1.msra.mxu0 0.0
  %328 = vmatprep.subr.mxu0 0.0
  %329 = vmatpush1.msra.mxu0 0.0
  %330 = vmatprep.subr.mxu0 0.0
  %331 = vmatpush1.msra.mxu0 0.0
  %332 = vmatprep.subr.mxu0 0.0
  %333 = vmatpush1.msra.mxu0 0.0
  %334 = vmatprep.subr.mxu0 0.0
  %335 = vmatpush1.msra.mxu0 0.0
  %336 = vmatprep.subr.mxu0 0.0
  %337 = vmatpush1.msra.mxu0 0.0
  %338 = vmatprep.subr.mxu0 0.0
  %339 = vmatpush1.msra.mxu0 0.0
  %340 = vmatprep.subr.mxu0 0.0
  %341 = vmatpush1.msra.mxu0 0.0
  %342 = vmatprep.subr.mxu0 0.0
  %343 = vmatpush1.msra.mxu0 0.0
  %344 = vmatprep.subr.mxu0 0.0
  %345 = vmatpush1.msra.mxu0 0.0
  %346 = vmatprep.mubr.f32.mxu0 0.0
  %347 = vmatmul.mubr.f32.gmra.mrb[0].mxu0 %v11
  %v348 = vpop.f32.mrb[0].mxu0
  %v349 = vadd.f32 0.0, %v348
  %v350 = vpop.f32.mrb[0].mxu0
  %v351 = vadd.f32 0.0, %v350
  %352 = vdwg.mxu0
  %353 = vmatprep.subr.mxu0 %v19
  %354 = vmatpush1.msra.mxu0 %v18
  %355 = vmatprep.subr.mxu0 %v27
  %356 = vmatpush1.msra.mxu0 %v26
  %357 = vmatprep.subr.mxu0 %v35
  %358 = vmatpush1.msra.mxu0 %v34
  %359 = vmatprep.subr.mxu0 %v43
  %360 = vmatpush1.msra.mxu0 %v42
  %361 = vmatprep.subr.mxu0 %v51
  %362 = vmatpush1.msra.mxu0 %v50
  %363 = vmatprep.subr.mxu0 %v59
  %364 = vmatpush1.msra.mxu0 %v58
  %365 = vmatprep.subr.mxu0 %v67
  %366 = vmatpush1.msra.mxu0 %v66
  %367 = vmatprep.subr.mxu0 %v75
  %368 = vmatpush1.msra.mxu0 %v74
  %369 = vmatprep.subr.mxu0 %v83
  %370 = vmatpush1.msra.mxu0 %v82
  %371 = vmatprep.subr.mxu0 %v91
  %372 = vmatpush1.msra.mxu0 %v90
  %373 = vmatprep.subr.mxu0 %v99
  %374 = vmatpush1.msra.mxu0 %v98
  %375 = vmatprep.subr.mxu0 %v107
  %376 = vmatpush1.msra.mxu0 %v106
  %377 = vmatprep.subr.mxu0 %v115
  %378 = vmatpush1.msra.mxu0 %v114
  %379 = vmatprep.subr.mxu0 %v123
  %380 = vmatpush1.msra.mxu0 %v122
  %381 = vmatprep.subr.mxu0 %v131
  %382 = vmatpush1.msra.mxu0 %v130
  %383 = vmatprep.subr.mxu0 %v139
  %384 = vmatpush1.msra.mxu0 %v138
  %385 = vmatprep.subr.mxu0 0.0
  %386 = vmatpush1.msra.mxu0 0.0
  %387 = vmatprep.subr.mxu0 0.0
  %388 = vmatpush1.msra.mxu0 0.0
  %389 = vmatprep.subr.mxu0 0.0
  %390 = vmatpush1.msra.mxu0 0.0
  %391 = vmatprep.subr.mxu0 0.0
  %392 = vmatpush1.msra.mxu0 0.0
  %393 = vmatprep.subr.mxu0 0.0
  %394 = vmatpush1.msra.mxu0 0.0
  %395 = vmatprep.subr.mxu0 0.0
  %396 = vmatpush1.msra.mxu0 0.0
  %397 = vmatprep.subr.mxu0 0.0
  %398 = vmatpush1.msra.mxu0 0.0
  %399 = vmatprep.subr.mxu0 0.0
  %400 = vmatpush1.msra.mxu0 0.0
  %401 = vmatprep.subr.mxu0 0.0
  %402 = vmatpush1.msra.mxu0 0.0
  %403 = vmatprep.subr.mxu0 0.0
  %404 = vmatpush1.msra.mxu0 0.0
  %405 = vmatprep.subr.mxu0 0.0
  %406 = vmatpush1.msra.mxu0 0.0
  %407 = vmatprep.subr.mxu0 0.0
  %408 = vmatpush1.msra.mxu0 0.0
  %409 = vmatprep.subr.mxu0 0.0
  %410 = vmatpush1.msra.mxu0 0.0
  %411 = vmatprep.subr.mxu0 0.0
  %412 = vmatpush1.msra.mxu0 0.0
  %413 = vmatprep.subr.mxu0 0.0
  %414 = vmatpush1.msra.mxu0 0.0
  %415 = vmatprep.subr.mxu0 0.0
  %416 = vmatpush1.msra.mxu0 0.0
  %417 = vmatprep.mubr.f32.mxu0 0.0
  %418 = vmatmul.mubr.f32.gmra.mrb[0].mxu0 %v11
  %v419 = vpop.f32.mrb[0].mxu0
  %v420 = vadd.f32 0.0, %v419
  %v421 = vpop.f32.mrb[0].mxu0
  %v422 = vadd.f32 0.0, %v421
  %423 = vdwg.mxu0
  %424 = vst [vmem:[%s2] sm:$0xff] %v207
  %425 = vst [vmem:[%s2 + $0x8] sm:$0xff] %v209
  %426 = vst [vmem:[%s2 + $0x10] sm:$0xff] %v278
  %427 = vst [vmem:[%s2 + $0x18] sm:$0xff] %v280
  %428 = vst [vmem:[%s2 + $0x20] sm:$0xff] %v349
  %429 = vst [vmem:[%s2 + $0x28] sm:$0xff] %v351
  %430 = vst [vmem:[%s2 + $0x30] sm:$0xff] %v420
  %431 = vst [vmem:[%s2 + $0x38] sm:$0xff] %v422
  // Predicated region
  $region10: #{outconv_forward.1} parent=0 // pred_check
    _
  $region11: #{outconv_forward.1} parent=0 // pred_check_branch
    %433 = sbr.rel (0) target = $region13
  $region12: #{outconv_forward.1} parent=0 // pred_region
    _
  $region13: #{outconv_forward.1} parent=0 // pred_fallthru
    _
  // Predicated region
  $region14: #{outconv_forward.1} parent=0 // pred_check
    _
  $region15: #{outconv_forward.1} parent=0 // pred_check_branch
    %435 = sbr.rel (0) target = $region17
  $region16: #{outconv_forward.1} parent=0 // pred_region
    _
  $region17: #{outconv_forward.1} parent=0 // pred_fallthru
    _

</llo_original>
